<compile_context>
chip_gen: v6e
topology: v6e:2x2x1
jax: 0.10.0
libtpu: 0.0.40
codegen_flags: <defaults>
</compile_context>

<pallas_src>
import functools

import jax
import jax.numpy as jnp
from jax.experimental import pallas as pl
from jax.experimental.pallas import tpu as pltpu


def time_embedder_kernel(t_ref, freqs_ref, phase_ref, w1_ref, b1_ref, w2_ref, b2_ref,
                         out_ref, *, time_scaling, dim, tb, t_resident):
    # --- timesteps for this batch tile ------------------------------------
    if t_resident:
        start = pl.multiple_of(pl.program_id(0) * tb, tb)
        t = t_ref[pl.ds(start, tb), :]                       # (tb, 1) f32
    else:
        t = t_ref[...]                                       # (tb, 1) f32

    # --- positional embedding, built directly in [cos | sin] lane layout --
    # sin(x) == cos(x - pi/2): the second half of `phase` is -pi/2, so a single
    # cos over (tb, dim) yields concat([cos, sin], -1) with no lane relayout.
    args = (t * time_scaling) * freqs_ref[...] + phase_ref[...]   # (tb, dim)
    emb = jnp.cos(args)

    # --- single-pass per-row standardization (ddof=1, matching torch.std) -
    s1 = jnp.sum(emb, axis=-1, keepdims=True)                # (tb, 1)
    s2 = jnp.sum(emb * emb, axis=-1, keepdims=True)          # (tb, 1)
    mean = s1 * (1.0 / dim)
    var = (s2 - s1 * mean) * (1.0 / (dim - 1))
    inv_std = jax.lax.rsqrt(var)                             # EUP, not VALU divide
    x = ((emb - mean) * inv_std).astype(jnp.bfloat16)        # (tb, dim)

    # --- MLP: Linear -> SiLU -> Linear (bf16 inputs, f32 accumulation) ----
    h = jnp.dot(x, w1_ref[...], preferred_element_type=jnp.float32) + b1_ref[...]
    # SiLU via one tanh (EUP) op; the extra mul/add land on the VALU which has slack.
    h = (0.5 * h) * (jnp.tanh(0.5 * h) + 1.0)

    out = (jnp.dot(h.astype(jnp.bfloat16), w2_ref[...],
                   preferred_element_type=jnp.float32) + b2_ref[...])
    out_ref[...] = out.astype(out_ref.dtype)


def _default_vmem_limit(B, tb, tn, dim, hidden):
    """Generous VMEM estimate (double-buffered blocks + temporaries)."""
    f32, bf16 = 4, 2
    blocks = 2 * (tb * f32                      # t block (worst case, blocked)
                  + 2 * dim * f32               # freqs + phase
                  + dim * hidden * bf16         # w1
                  + hidden * f32                # b1
                  + hidden * tn * bf16          # w2 column tile
                  + tn * f32                    # b2 column tile
                  + tb * tn * f32)              # out tile
    blocks += B * f32                           # resident t copy
    temps = (tb * dim * (4 * f32 + bf16)        # args/emb/centered/x
             + tb * hidden * (3 * f32 + bf16)   # h, silu temporaries
             + 2 * tb * tn * f32)               # out accumulators
    est = int(1.5 * (blocks + temps))
    if est <= (28 << 20):
        return None                             # comfortably under the default scoped limit
    return min(est, 128 << 20)


def time_embedder(t, params, *, time_scaling, dim, expansion=4,
                  block_b=512, block_n=None, out_dtype=jnp.float32,
                  vmem_limit_bytes=None):
    """t: (B,) float32. Returns (B, dim*expansion) in `out_dtype`.

    block_b: batch rows per grid step (sweep 512-1024 on v6e for large B).
    block_n: output-column tile; set to e.g. hidden//2 on v7x small-batch calls so
             the second TensorCore gets work and per-core w2 residency halves.
    out_dtype: use jnp.bfloat16 on v5e if downstream accepts it (halves writeback).
    """
    B = t.shape[0]
    hidden = dim * expansion
    t2d = t.reshape(B, 1).astype(jnp.float32)

    # Batch tiling.
    tb = B if B <= block_b else block_b
    grid_b = pl.cdiv(B, tb)
    # t stays VMEM-resident (no per-step DMA) whenever the batch tiling is exact.
    t_resident = (B % tb == 0)

    # Output-column tiling (second parallel grid axis).
    if block_n is None or block_n >= hidden:
        tn = hidden
    else:
        tn = max(128, (block_n // 128) * 128)
        if hidden % tn != 0:
            tn = hidden                         # keep blocks exact; fall back to no split
    grid_n = pl.cdiv(hidden, tn)

    if vmem_limit_bytes is None:
        vmem_limit_bytes = _default_vmem_limit(B, tb, tn, dim, hidden)

    kernel = functools.partial(time_embedder_kernel,
                               time_scaling=float(time_scaling), dim=dim,
                               tb=tb, t_resident=t_resident)

    if t_resident:
        t_spec = pl.BlockSpec((B, 1), lambda i, j: (0, 0))
    else:
        t_spec = pl.BlockSpec((tb, 1), lambda i, j: (i, 0))

    in_specs = [
        t_spec,                                               # t
        pl.BlockSpec((1, dim), lambda i, j: (0, 0)),          # freqs (full width)
        pl.BlockSpec((1, dim), lambda i, j: (0, 0)),          # phase (full width)
        pl.BlockSpec((dim, hidden), lambda i, j: (0, 0)),     # w1 (bf16), resident
        pl.BlockSpec((1, hidden), lambda i, j: (0, 0)),       # b1, resident
        pl.BlockSpec((hidden, tn), lambda i, j: (0, j)),      # w2 column tile (bf16)
        pl.BlockSpec((1, tn), lambda i, j: (0, j)),           # b2 column tile
    ]
    out_specs = pl.BlockSpec((tb, tn), lambda i, j: (i, j))

    return pl.pallas_call(
        kernel,
        out_shape=jax.ShapeDtypeStruct((B, hidden), out_dtype),
        grid=(grid_b, grid_n),
        in_specs=in_specs,
        out_specs=out_specs,
        compiler_params=pltpu.CompilerParams(
            dimension_semantics=("parallel", "parallel"),
            vmem_limit_bytes=vmem_limit_bytes),
    )(t2d, params["freqs"], params["phase"], params["w1"], params["b1"],
      params["w2"], params["b2"])


def init_params(key, dim, expansion=4):
    """Deterministic synthetic parameters (shapes match the nn.Module)."""
    hidden = dim * expansion
    half = dim // 2
    k1, k2, k3, k4 = jax.random.split(key, 4)
    # PositionalEmbedding(endpoint=True, max_positions=10000) frequency table,
    # stored at full width with a -pi/2 phase on the sin half (sin x = cos(x - pi/2)).
    f = jnp.arange(half, dtype=jnp.float32) / jnp.float32(max(half - 1, 1))
    freqs_half = (1.0 / 10000.0) ** f                         # (half,)
    freqs = jnp.concatenate([freqs_half, freqs_half]).reshape(1, dim)
    phase = jnp.concatenate([jnp.zeros((half,), jnp.float32),
                             jnp.full((half,), -0.5 * jnp.pi, jnp.float32)]
                            ).reshape(1, dim)
    # nn.Linear weights stored transposed (in, out), bf16 for HBM + MXU efficiency.
    w1 = (jax.random.normal(k1, (dim, hidden), jnp.float32) * 0.02).astype(jnp.bfloat16)
    w2 = (jax.random.normal(k3, (hidden, hidden), jnp.float32) * 0.02).astype(jnp.bfloat16)
    return {
        "freqs": freqs,
        "phase": phase,
        "w1": w1,
        "b1": jax.random.normal(k2, (1, hidden), jnp.float32) * 0.02,
        "w2": w2,
        "b2": jax.random.normal(k4, (1, hidden), jnp.float32) * 0.02,
    }


def time_embedder_ref(t, params, *, time_scaling, dim):
    """Pure-JAX reference mirroring the module (exact sin, two-pass std, exact sigmoid)."""
    half = dim // 2
    freqs = params["freqs"][:, :half]
    args = (t.reshape(-1, 1).astype(jnp.float32) * time_scaling) * freqs
    emb = jnp.concatenate([jnp.cos(args), jnp.sin(args)], axis=-1)
    mean = emb.mean(-1, keepdims=True)
    std = jnp.sqrt(((emb - mean) ** 2).sum(-1, keepdims=True) / (dim - 1))
    x = ((emb - mean) / std).astype(jnp.bfloat16)
    h = jnp.dot(x, params["w1"], preferred_element_type=jnp.float32) + params["b1"]
    h = h * jax.nn.sigmoid(h)
    return (jnp.dot(h.astype(jnp.bfloat16), params["w2"],
                    preferred_element_type=jnp.float32) + params["b2"])


if __name__ == "__main__":
    TIME_SCALING = 1000.0
    key = jax.random.PRNGKey(0)

    configs = [
        # (B, dim, expansion, block_b, block_n)
        dict(B=8,    dim=32,  expansion=4, block_b=512, block_n=None),  # spec-scale small case
        dict(B=16,   dim=256, expansion=4, block_b=512, block_n=512),   # output-column grid (2 tiles)
        dict(B=1024, dim=32,  expansion=4, block_b=512, block_n=None),  # batch tiling, resident t
    ]

    for cfg in configs:
        key, k_t, k_p = jax.random.split(key, 3)
        t = jax.random.uniform(k_t, (cfg["B"],), jnp.float32)   # diffusion times in [0, 1)
        params = init_params(k_p, cfg["dim"], cfg["expansion"])

        out = time_embedder(t, params, time_scaling=TIME_SCALING, dim=cfg["dim"],
                            expansion=cfg["expansion"], block_b=cfg["block_b"],
                            block_n=cfg["block_n"])
        out = jax.block_until_ready(out)

        ref = time_embedder_ref(t, params, time_scaling=TIME_SCALING, dim=cfg["dim"])
        assert out.shape == (cfg["B"], cfg["dim"] * cfg["expansion"])
        # bf16 weights/activations (mirrored in the reference) -> loose tolerance.
        assert jnp.allclose(out, ref, atol=3e-3, rtol=2e-2), f"mismatch vs reference for {cfg}"

    print("KERNEL_OK")
</pallas_src>

<mosaic_0001>
module attributes {stable_mosaic.version = 11 : i64} {
  func.func @time_embedder_kernel(%arg0: i32, %arg1: i32, %arg2: memref<8x1xf32, #tpu.memory_space<vmem>>, %arg3: memref<1x32xf32, #tpu.memory_space<vmem>>, %arg4: memref<1x32xf32, #tpu.memory_space<vmem>>, %arg5: memref<32x128xbf16, #tpu.memory_space<vmem>>, %arg6: memref<1x128xf32, #tpu.memory_space<vmem>>, %arg7: memref<128x128xbf16, #tpu.memory_space<vmem>>, %arg8: memref<1x128xf32, #tpu.memory_space<vmem>>, %arg9: memref<8x128xf32, #tpu.memory_space<vmem>>) attributes {dimension_semantics = [#tpu.dimension_semantics<parallel>, #tpu.dimension_semantics<parallel>], iteration_bounds = array<i64: 1, 1>, scalar_prefetch = 0 : i64, scratch_operands = 0 : i64, tpu.core_type = #tpu.core_type<tc>, window_params = [{pipeline_mode = #tpu.pipeline_mode<synchronous>, transform_indices = @transform_0, window_bounds = array<i64: 8, 1>}, {pipeline_mode = #tpu.pipeline_mode<synchronous>, transform_indices = @transform_1, window_bounds = array<i64: 1, 32>}, {pipeline_mode = #tpu.pipeline_mode<synchronous>, transform_indices = @transform_2, window_bounds = array<i64: 1, 32>}, {pipeline_mode = #tpu.pipeline_mode<synchronous>, transform_indices = @transform_3, window_bounds = array<i64: 32, 128>}, {pipeline_mode = #tpu.pipeline_mode<synchronous>, transform_indices = @transform_4, window_bounds = array<i64: 1, 128>}, {transform_indices = @transform_5, window_bounds = array<i64: 128, 128>}, {transform_indices = @transform_6, window_bounds = array<i64: 1, 128>}, {transform_indices = @transform_7, window_bounds = array<i64: 8, 128>}]} {
    %c8_i32 = arith.constant 8 : i32
    %0 = arith.muli %arg0, %c8_i32 : i32
    %1 = tpu.assume_multiple %0, 8 : i32
    %2 = arith.index_cast %1 : i32 to index
    %c0 = arith.constant 0 : index
    %3 = vector.load %arg2[%2, %c0] : memref<8x1xf32, #tpu.memory_space<vmem>>, vector<8x1xf32>
    %cst = arith.constant 1.000000e+03 : f32
    %4 = vector.broadcast %cst : f32 to vector<8x1xf32>
    %5 = arith.mulf %3, %4 : vector<8x1xf32>
    %c0_0 = arith.constant 0 : index
    %c0_1 = arith.constant 0 : index
    %6 = vector.load %arg3[%c0_0, %c0_1] : memref<1x32xf32, #tpu.memory_space<vmem>>, vector<1x32xf32>
    %7 = vector.broadcast %5 : vector<8x1xf32> to vector<8x32xf32>
    %8 = vector.broadcast %6 : vector<1x32xf32> to vector<8x32xf32>
    %9 = arith.mulf %7, %8 : vector<8x32xf32>
    %c0_2 = arith.constant 0 : index
    %c0_3 = arith.constant 0 : index
    %10 = vector.load %arg4[%c0_2, %c0_3] : memref<1x32xf32, #tpu.memory_space<vmem>>, vector<1x32xf32>
    %11 = vector.broadcast %10 : vector<1x32xf32> to vector<8x32xf32>
    %12 = arith.addf %9, %11 : vector<8x32xf32>
    %13 = math.cos %12 : vector<8x32xf32>
    %cst_4 = arith.constant dense<0.000000e+00> : vector<8xf32>
    %14 = vector.multi_reduction <add>, %13, %cst_4 [1] : vector<8x32xf32> to vector<8xf32>
    %15 = vector.shape_cast %14 : vector<8xf32> to vector<8x1xf32>
    %16 = arith.mulf %13, %13 : vector<8x32xf32>
    %cst_5 = arith.constant dense<0.000000e+00> : vector<8xf32>
    %17 = vector.multi_reduction <add>, %16, %cst_5 [1] : vector<8x32xf32> to vector<8xf32>
    %18 = vector.shape_cast %17 : vector<8xf32> to vector<8x1xf32>
    %cst_6 = arith.constant 3.125000e-02 : f32
    %19 = vector.broadcast %cst_6 : f32 to vector<8x1xf32>
    %20 = arith.mulf %15, %19 : vector<8x1xf32>
    %21 = arith.mulf %15, %20 : vector<8x1xf32>
    %22 = arith.subf %18, %21 : vector<8x1xf32>
    %cst_7 = arith.constant 0.0322580636 : f32
    %23 = vector.broadcast %cst_7 : f32 to vector<8x1xf32>
    %24 = arith.mulf %22, %23 : vector<8x1xf32>
    %25 = math.rsqrt %24 : vector<8x1xf32>
    %26 = vector.broadcast %20 : vector<8x1xf32> to vector<8x32xf32>
    %27 = arith.subf %13, %26 : vector<8x32xf32>
    %28 = vector.broadcast %25 : vector<8x1xf32> to vector<8x32xf32>
    %29 = arith.mulf %27, %28 : vector<8x32xf32>
    %30 = arith.truncf %29 : vector<8x32xf32> to vector<8x32xbf16>
    %c0_8 = arith.constant 0 : index
    %c0_9 = arith.constant 0 : index
    %31 = vector.load %arg5[%c0_8, %c0_9] : memref<32x128xbf16, #tpu.memory_space<vmem>>, vector<32x128xbf16>
    %cst_10 = arith.constant dense<0.000000e+00> : vector<8x128xf32>
    %32 = tpu.matmul %30, %31, %cst_10 {dimension_numbers = #tpu.dot_dimension_numbers<[1], [0], [0], [1], [0, 0, 1, 1], [], []>} : vector<8x32xbf16>, vector<32x128xbf16>, vector<8x128xf32> -> vector<8x128xf32>
    %c0_11 = arith.constant 0 : index
    %c0_12 = arith.constant 0 : index
    %33 = vector.load %arg6[%c0_11, %c0_12] : memref<1x128xf32, #tpu.memory_space<vmem>>, vector<1x128xf32>
    %34 = vector.broadcast %33 : vector<1x128xf32> to vector<8x128xf32>
    %35 = arith.addf %32, %34 : vector<8x128xf32>
    %cst_13 = arith.constant 5.000000e-01 : f32
    %36 = vector.broadcast %cst_13 : f32 to vector<8x128xf32>
    %37 = arith.mulf %36, %35 : vector<8x128xf32>
    %cst_14 = arith.constant 5.000000e-01 : f32
    %38 = vector.broadcast %cst_14 : f32 to vector<8x128xf32>
    %39 = arith.mulf %38, %35 : vector<8x128xf32>
    %40 = math.tanh %39 : vector<8x128xf32>
    %cst_15 = arith.constant 1.000000e+00 : f32
    %41 = vector.broadcast %cst_15 : f32 to vector<8x128xf32>
    %42 = arith.addf %40, %41 : vector<8x128xf32>
    %43 = arith.mulf %37, %42 : vector<8x128xf32>
    %44 = arith.truncf %43 : vector<8x128xf32> to vector<8x128xbf16>
    %c0_16 = arith.constant 0 : index
    %c0_17 = arith.constant 0 : index
    %45 = vector.load %arg7[%c0_16, %c0_17] : memref<128x128xbf16, #tpu.memory_space<vmem>>, vector<128x128xbf16>
    %cst_18 = arith.constant dense<0.000000e+00> : vector<8x128xf32>
    %46 = tpu.matmul %44, %45, %cst_18 {dimension_numbers = #tpu.dot_dimension_numbers<[1], [0], [0], [1], [0, 0, 1, 1], [], []>} : vector<8x128xbf16>, vector<128x128xbf16>, vector<8x128xf32> -> vector<8x128xf32>
    %c0_19 = arith.constant 0 : index
    %c0_20 = arith.constant 0 : index
    %47 = vector.load %arg8[%c0_19, %c0_20] : memref<1x128xf32, #tpu.memory_space<vmem>>, vector<1x128xf32>
    %48 = vector.broadcast %47 : vector<1x128xf32> to vector<8x128xf32>
    %49 = arith.addf %46, %48 : vector<8x128xf32>
    %c0_21 = arith.constant 0 : index
    %c0_22 = arith.constant 0 : index
    %50 = vector.load %arg9[%c0_21, %c0_22] : memref<8x128xf32, #tpu.memory_space<vmem>>, vector<8x128xf32>
    tpu.vector_store %arg9[%c0_21, %c0_22], %49 {strides = array<i32>} : memref<8x128xf32, #tpu.memory_space<vmem>>, vector<8x128xf32>,
    return
  }
  func.func @transform_0(%arg0: i32, %arg1: i32) -> (i32, i32) {
    %c0_i32 = arith.constant 0 : i32
    %c0_i32_0 = arith.constant 0 : i32
    %c0_i32_1 = arith.constant 0 : i32
    return %c0_i32, %c0_i32_0 : i32, i32
  }
  func.func @transform_1(%arg0: i32, %arg1: i32) -> (i32, i32) {
    %c0_i32 = arith.constant 0 : i32
    %c0_i32_0 = arith.constant 0 : i32
    %c0_i32_1 = arith.constant 0 : i32
    return %c0_i32, %c0_i32_0 : i32, i32
  }
  func.func @transform_2(%arg0: i32, %arg1: i32) -> (i32, i32) {
    %c0_i32 = arith.constant 0 : i32
    %c0_i32_0 = arith.constant 0 : i32
    %c0_i32_1 = arith.constant 0 : i32
    return %c0_i32, %c0_i32_0 : i32, i32
  }
  func.func @transform_3(%arg0: i32, %arg1: i32) -> (i32, i32) {
    %c0_i32 = arith.constant 0 : i32
    %c0_i32_0 = arith.constant 0 : i32
    %c0_i32_1 = arith.constant 0 : i32
    return %c0_i32, %c0_i32_0 : i32, i32
  }
  func.func @transform_4(%arg0: i32, %arg1: i32) -> (i32, i32) {
    %c0_i32 = arith.constant 0 : i32
    %c0_i32_0 = arith.constant 0 : i32
    %c0_i32_1 = arith.constant 0 : i32
    return %c0_i32, %c0_i32_0 : i32, i32
  }
  func.func @transform_5(%arg0: i32, %arg1: i32) -> (i32, i32) {
    %c0_i32 = arith.constant 0 : i32
    %c0_i32_0 = arith.constant 0 : i32
    return %c0_i32, %arg1 : i32, i32
  }
  func.func @transform_6(%arg0: i32, %arg1: i32) -> (i32, i32) {
    %c0_i32 = arith.constant 0 : i32
    %c0_i32_0 = arith.constant 0 : i32
    return %c0_i32, %arg1 : i32, i32
  }
  func.func @transform_7(%arg0: i32, %arg1: i32) -> (i32, i32) {
    %c0_i32 = arith.constant 0 : i32
    return %arg0, %arg1 : i32, i32
  }
}

</mosaic_0001>

<llo_original>
// kernel: tpu_custom_call.1
$region0: #{tpu_custom_call.1}
  #allocation0 [shape = 'u32[]', space=smem, size = 0x4, offset = 0x4, fixed_abs, tag = 'smem constant byte address 0x4 - core index']
  #allocation1 [shape = 'u32[144,128]{1,0:T(1,128)}', space=vmem, size = 0x12000, scoped, tag = 'internal scratch']
  %s0 = inlined_call_operand.vmem [shape: f32[8,1], index: 0, kind: input, shape index: {}]
  %s1 = inlined_call_operand.vmem [shape: f32[1,32], index: 1, kind: input, shape index: {}]
  %s2 = inlined_call_operand.vmem [shape: f32[1,32], index: 2, kind: input, shape index: {}]
  %s3 = inlined_call_operand.hbm [shape: bf16[32,128], index: 3, kind: input, shape index: {}]
  %s4 = inlined_call_operand.vmem [shape: f32[1,128], index: 4, kind: input, shape index: {}]
  %s5 = inlined_call_operand.hbm [shape: bf16[128,128], index: 5, kind: input, shape index: {}]
  %s6 = inlined_call_operand.vmem [shape: f32[1,128], index: 6, kind: input, shape index: {}]
  %s7 = inlined_call_operand.hbm [shape: f32[8,128], index: 7, kind: output, shape index: {}]
  %s8 = sld [smem:[#allocation0]]
  $region46: #{tpu_custom_call.1} parent=0
    _
  %s10 = ssub.s32 1, %s8
  %s11 = scalar_select 0, %s10, %s8
  $region1: #{tpu_custom_call.1} parent=0
    #allocation2 [shape = 'u8[8192]{0}', space=vmem, size = 0x2000, scoped, tag = 'input window, operand 3, single buffered']
    #allocation3 [shape = 's32[1]{0}', space=sflag, size = 0x4, scoped, tag = 'scoped memory for tpu_custom_call.1']
    #allocation4 [shape = 's32[1]{0}', space=sflag, size = 0x4, scoped, tag = 'scoped memory for tpu_custom_call.1']
    #allocation5 [shape = 'u8[32768]{0}', space=vmem, size = 0x8000, scoped, tag = 'input window, operand 5, single buffered']
    #allocation6 [shape = 's32[1]{0}', space=sflag, size = 0x4, scoped, tag = 'scoped memory for tpu_custom_call.1']
    #allocation7 [shape = 'u8[4096]{0}', space=vmem, size = 0x1000, scoped, tag = 'output window, operand 0, single buffered']
    %12 = vsyncpa [#allocation3], 0
    %13 = vsyncpa [#allocation6], 0
    %14 = vsyncpa [#allocation4], 0
    // Predicated region
    $region2: #{tpu_custom_call.1} parent=1 // pred_check
      _
    $region3: #{tpu_custom_call.1} parent=1 // pred_check_branch
      %16 = sbr.rel (0) target = $region5
    $region4: #{tpu_custom_call.1} parent=1 // pred_region
      _
    $region5: #{tpu_custom_call.1} parent=1 // pred_fallthru
      _
    // Predicated region
    $region6: #{tpu_custom_call.1} parent=1 // pred_check
      _
    $region7: #{tpu_custom_call.1} parent=1 // pred_check_branch
      %18 = sbr.rel (0) target = $region9
    $region8: #{tpu_custom_call.1} parent=1 // pred_region
      _
    $region9: #{tpu_custom_call.1} parent=1 // pred_fallthru
      _
    // Predicated region
    $region10: #{tpu_custom_call.1} parent=1 // pred_check
      _
    $region11: #{tpu_custom_call.1} parent=1 // pred_check_branch
      %20 = sbr.rel (0) target = $region13
    $region12: #{tpu_custom_call.1} parent=1 // pred_region
      _
    $region13: #{tpu_custom_call.1} parent=1 // pred_fallthru
      _
    // Predicated region
    $region14: #{tpu_custom_call.1} parent=1 // pred_check
      _
    $region15: #{tpu_custom_call.1} parent=1 // pred_check_branch
      %22 = sbr.rel (0) target = $region17
    $region16: #{tpu_custom_call.1} parent=1 // pred_region
      %s24 = ssub.s32 256, 256
      %25 = vsyncadd [#allocation3], %s24
      %s26 = sshll.u32 [#allocation2], 4
      %s27 = int_to_ptr.vmem [resolvable:$true] %s26
      %32 = dma.hbm_to_vmem [thread:$0]  %s3, 256, %s27, [#allocation3], 64, 64, 4
    $region17: #{tpu_custom_call.1} parent=1 // pred_fallthru
      _
    // Predicated region
    $region18: #{tpu_custom_call.1} parent=1 // pred_check
      _
    $region19: #{tpu_custom_call.1} parent=1 // pred_check_branch
      %34 = sbr.rel (0) target = $region21
    $region20: #{tpu_custom_call.1} parent=1 // pred_region
      _
    $region21: #{tpu_custom_call.1} parent=1 // pred_fallthru
      _
    // Predicated region
    $region22: #{tpu_custom_call.1} parent=1 // pred_check
      _
    $region23: #{tpu_custom_call.1} parent=1 // pred_check_branch
      %36 = sbr.rel (0) target = $region25
    $region24: #{tpu_custom_call.1} parent=1 // pred_region
      %s38 = ssub.s32 1024, 1024
      %39 = vsyncadd [#allocation6], %s38
      %s40 = sshll.u32 [#allocation5], 4
      %s41 = int_to_ptr.vmem [resolvable:$true] %s40
      %46 = dma.hbm_to_vmem [thread:$0]  %s5, 1024, %s41, [#allocation6], 64, 64, 4
    $region25: #{tpu_custom_call.1} parent=1 // pred_fallthru
      _
    // Predicated region
    $region26: #{tpu_custom_call.1} parent=1 // pred_check
      _
    $region27: #{tpu_custom_call.1} parent=1 // pred_check_branch
      %48 = sbr.rel (0) target = $region29
    $region28: #{tpu_custom_call.1} parent=1 // pred_region
      _
    $region29: #{tpu_custom_call.1} parent=1 // pred_fallthru
      _
    // Predicated region
    $region30: #{tpu_custom_call.1} parent=1 // pred_check
      _
    $region31: #{tpu_custom_call.1} parent=1 // pred_check_branch
      %50 = sbr.rel (0) target = $region33
    $region32: #{tpu_custom_call.1} parent=1 // pred_region
      %51 = dma.done [#allocation3], 256
    $region33: #{tpu_custom_call.1} parent=1 // pred_fallthru
      _
    // Predicated region
    $region34: #{tpu_custom_call.1} parent=1 // pred_check
      _
    $region35: #{tpu_custom_call.1} parent=1 // pred_check_branch
      %53 = sbr.rel (0) target = $region37
    $region36: #{tpu_custom_call.1} parent=1 // pred_region
      %54 = dma.done [#allocation6], 1024
    $region37: #{tpu_custom_call.1} parent=1 // pred_fallthru
      _
    %s56 = smul.u32 0, 8
    %s57 = scalar_lea.vmem %s0, %s56
    %v58 = vld [vmem:[%s57] sm:$0xff]
    %v59 = vmul.f32 %v58, 1000.0
    %v60 = vld [vmem:[%s1] sm:$0x1]
    %62 = vset.pattern.permute.xlu0 0
    %63 = vperm.xlu0 %62, %v59
    %v64 = vpop.permute.xlu0 %63
    %v67 = vlaneseq
    %v68 = vshrl.u32 %v67, 7
    %v69 = vsub.s32 0, %v68
    %v70 = vrot.slane %v60, %v69
    %v72 = vmul.f32 %v64, %v70
    %v73 = vld [vmem:[%s2] sm:$0x1]
    %v75 = vlaneseq
    %v76 = vshrl.u32 %v75, 7
    %v77 = vsub.s32 0, %v76
    %v78 = vrot.slane %v73, %v77
    %v80 = vadd.f32 %v72, %v78
    %v81 = vand.u32 2147483647, %v80
    %vm82 = vcmp.le.f32.partialorder %v81, 0.7853982
    %vm83 = vcmp.lt.s32.totalorder %v80, 0
    %v84 = vand.u32 %v80, 2139095040
    %v85 = vshrl.u32 %v84, 23
    %v86 = vsub.s32 %v85, 127
    %v87 = vand.u32 2147483647, %v80
    %v88 = vand.u32 %v87, 8388607
    %v89 = vor.u32 %v88, 8388608
    %v90 = vsub.s32 0, %v89
    %v91 = vadd.s32 %v86, 1
    %vm92 = vcmp.gt.s32.totalorder %v91, 0
    %v93 = vsel %vm92, %v91, 0
    %v94 = vshrl.u32 %v93, 5
    %v95 = vand.u32 %v93, 31
    %v96 = vsub.s32 32, %v95
    %v97 = vshrl.u32 683565275, %v96
    %v98 = vshll.u32 683565275, %v95
    %v99 = vshrl.u32 2475754826, %v96
    %v100 = vor.u32 %v98, %v99
    %v101 = vshll.u32 2475754826, %v95
    %v102 = vshrl.u32 2131351028, %v96
    %v103 = vor.u32 %v101, %v102
    %v104 = vshll.u32 2131351028, %v95
    %v105 = vshrl.u32 2102212464, %v96
    %v106 = vor.u32 %v104, %v105
    %v107 = vshll.u32 2102212464, %v95
    %v108 = vshrl.u32 920167782, %v96
    %v109 = vor.u32 %v107, %v108
    %v110 = vshll.u32 920167782, %v95
    %v111 = vshrl.u32 1326507024, %v96
    %v112 = vor.u32 %v110, %v111
    %vm113 = vcmp.lt.s32.totalorder %v94, 1
    %vm114 = vcmp.lt.s32.totalorder %v94, 2
    %vm115 = vcmp.lt.s32.totalorder %v94, 3
    %vm116 = vcmp.lt.s32.totalorder %v94, 4
    %v117 = vsel %vm113, %v97, %v100
    %v118 = vsel %vm116, %v106, 2102212464
    %v119 = vsel %vm115, %v103, %v118
    %v120 = vsel %vm114, %v117, %v119
    %v121 = vsel %vm113, %v100, %v103
    %v122 = vsel %vm116, %v109, 920167782
    %v123 = vsel %vm115, %v106, %v122
    %v124 = vsel %vm114, %v121, %v123
    %v125 = vsel %vm113, %v103, %v106
    %v126 = vsel %vm116, %v112, 1326507024
    %v127 = vsel %vm115, %v109, %v126
    %v128 = vsel %vm114, %v125, %v127
    %v129 = vshll.u32 %v89, 8
    %v130 = vmul.u32.u64.compose %v129, %v128
    %v131 = vextract.low.u32 %v130
    %v132 = vextract.high.u32 %v130
    %v133 = vmul.u32.u64.compose %v129, %v124
    %v134 = vextract.low.u32 %v133
    %v135 = vextract.high.u32 %v133
    %v136 = vmul.u32 %v129, %v120
    %v137 = vadd.s32 %v132, %v134
    %vm138 = vc.u32 %v132, %v134
    %v139 = vadd.s32 %v135, 1
    %v140 = vsel %vm138, %v139, %v135
    %v141 = vadd.s32 %v136, %v140
    %v142 = vadd.s32 %v141, 536870912
    %v143 = vshrl.u32 %v142, 30
    %v144 = vshll.u32 %v143, 30
    %v145 = vsub.s32 %v141, %v144
    %vm146 = vcmp.lt.s32.totalorder %v145, 0
    %v147 = vsub.s32 0, %v145
    %v148 = vsel %vm146, %v147, %v145
    %v149 = vclz %v148
    %v150 = vsub.s32 %v149, 2
    %vm151 = vcmp.gt.s32.totalorder 0, %v150
    %v152 = vsel %vm151, 0, %v150
    %v153 = vsub.s32 32, %v152
    %v154 = vshll.u32 %v145, %v152
    %v155 = vshrl.u32 %v137, %v153
    %v156 = vor.u32 %v154, %v155
    %v157 = vsub.s32 4294967266, %v152
    %v158 = vadd.s32 %v157, 127
    %v159 = vshll.u32 %v158, 23
    %v160 = vor.u32 4788187, %v159
    %v161 = vand.u32 2147483647, %v160
    %v163 = vcvt.s32.f32 %v156
    %v164 = vmul.f32 %v163, %v161
    %v165 = vxor.u32 %v164, 2147483648
    %v166 = vsel %vm83, %v165, %v164
    %v167 = vsub.s32 4, %v143
    %v168 = vsel %vm83, %v167, %v143
    %v169 = vsel %vm82, %v80, %v166
    %v170 = vsel %vm82, 0, %v168
    %v171 = vcosq.f32.pop %v169
    %v172 = vsinq.f32.pop %v169
    %vm173 = vweird.f32 %v80
    %v174 = vand.u32 %v170, 3
    %vm175 = vcmp.lt.s32.totalorder %v174, 2
    %vm176 = vcmp.eq.s32.totalorder %v174, 0
    %v177 = vxor.u32 %v172, 2147483648
    %v178 = vsel %vm176, %v171, %v177
    %vm179 = vcmp.eq.s32.totalorder %v174, 2
    %v180 = vxor.u32 %v171, 2147483648
    %v181 = vsel %vm179, %v180, %v172
    %v182 = vsel %vm175, %v178, %v181
    %v183 = vsel %vm173, nan, %v182
    %vm184 = vcmask 261120
    %v185 = vsel %vm184, %v183, 0.0
    %186 = vadd.xlane.f32.xlu0 %v185
    %v187 = vpop.xlane.xlu0 %186
    %v188 = vmul.f32 %v183, %v183
    %v189 = vsel %vm184, %v188, 0.0
    %190 = vadd.xlane.f32.xlu0 %v189
    %v191 = vpop.xlane.xlu0 %190
    %v192 = vmul.f32 %v187, 0.03125
    %v193 = vmul.f32 %v187, %v192
    %v194 = vsub.f32 %v191, %v193
    %v195 = vmul.f32 %v194, 0.032258064
    %v196 = vrsqrt.pop %v195
    %v197 = vsub.f32 %v183, %v192
    %v198 = vmul.f32 %v197, %v196
    %v199 = vpack.c.bf16 %v198, %v198
    %v200 = vld [vmem:[#allocation2] sm:$0xf]
    %v201 = vld [vmem:[#allocation2 + $0x4] sm:$0xf]
    %v202 = vld [vmem:[#allocation2 + $0x8] sm:$0xf]
    %v203 = vld [vmem:[#allocation2 + $0xc] sm:$0xf]
    %v204 = vld [vmem:[%s4] sm:$0x1]
    %v206 = vlaneseq
    %v207 = vshrl.u32 %v206, 7
    %v208 = vsub.s32 0, %v207
    %v209 = vrot.slane %v204, %v208
    %v215 = vunpack.c.l.b16 %v200
    %v216 = vunpack.c.l.b16 %v201
    %v217 = vunpack.c.l.b16 %v202
    %v218 = vunpack.c.l.b16 %v203
    %v219 = vpack.c.b16 %v216, %v215
    %v220 = vpack.c.b16 %v218, %v217
    %v224 = vsel %vm184, %v199, 0
    %226 = vmatprep.subr.bf16.mxu0 0
    %227 = vmatpush1.bf16.msra.mxu0 0
    %228 = vmatprep.subr.bf16.mxu0 0
    %229 = vmatpush1.bf16.msra.mxu0 0
    %230 = vmatprep.subr.bf16.mxu0 0
    %231 = vmatpush1.bf16.msra.mxu0 0
    %232 = vmatprep.subr.bf16.mxu0 0
    %233 = vmatpush1.bf16.msra.mxu0 0
    %234 = vmatprep.subr.bf16.mxu0 0
    %235 = vmatpush1.bf16.msra.mxu0 0
    %236 = vmatprep.subr.bf16.mxu0 0
    %237 = vmatpush1.bf16.msra.mxu0 0
    %238 = vmatprep.subr.bf16.mxu0 0
    %239 = vmatpush1.bf16.msra.mxu0 %v220
    %240 = vmatprep.subr.bf16.mxu0 0
    %241 = vmatpush1.bf16.msra.mxu0 %v219
    %242 = vmatprep.subr.bf16.mxu0 0
    %243 = vmatpush2.bf16.msra.mxu0 0
    %244 = vmatprep.subr.bf16.mxu0 0
    %245 = vmatpush2.bf16.msra.mxu0 0
    %246 = vmatprep.subr.bf16.mxu0 0
    %247 = vmatpush2.bf16.msra.mxu0 0
    %248 = vmatprep.subr.bf16.mxu0 0
    %249 = vmatpush2.bf16.msra.mxu0 0
    %250 = vmatprep.subr.bf16.mxu0 0
    %251 = vmatpush2.bf16.msra.mxu0 0
    %252 = vmatprep.subr.bf16.mxu0 0
    %253 = vmatpush2.bf16.msra.mxu0 0
    %254 = vmatprep.subr.bf16.mxu0 0
    %255 = vmatpush2.bf16.msra.mxu0 0
    %256 = vmatprep.subr.bf16.mxu0 0
    %257 = vmatpush2.bf16.msra.mxu0 0
    %258 = vmatprep.mubr.bf16.mxu0 0
    %259 = vmatmul.mubr.bf16.gmra.mxu0 %v224
    %v260 = vpop.f32.mrf.mxu0
    %v261 = vadd.f32 %v209, %v260
    %v262 = vpop.f32.mrf.mxu0
    %v263 = vpop.f32.mrf.mxu0
    %v264 = vpop.f32.mrf.mxu0
    %265 = vdwg.mxu0
    %v266 = vmul.f32 %v261, 0.5
    %v267 = vtanh.pop %v266
    %v268 = vadd.f32 %v267, 1.0
    %v269 = vmul.f32 %v266, %v268
    %v270 = vpack.c.bf16 %v269, %v269
    %v271 = vld [vmem:[#allocation5] sm:$0xf]
    %v272 = vld [vmem:[#allocation5 + $0x4] sm:$0xf]
    %v273 = vld [vmem:[#allocation5 + $0x8] sm:$0xf]
    %v274 = vld [vmem:[#allocation5 + $0xc] sm:$0xf]
    %v275 = vld [vmem:[#allocation5 + $0x10] sm:$0xf]
    %v276 = vld [vmem:[#allocation5 + $0x14] sm:$0xf]
    %v277 = vld [vmem:[#allocation5 + $0x18] sm:$0xf]
    %v278 = vld [vmem:[#allocation5 + $0x1c] sm:$0xf]
    %v279 = vld [vmem:[#allocation5 + $0x20] sm:$0xf]
    %v280 = vld [vmem:[#allocation5 + $0x24] sm:$0xf]
    %v281 = vld [vmem:[#allocation5 + $0x28] sm:$0xf]
    %v282 = vld [vmem:[#allocation5 + $0x2c] sm:$0xf]
    %v283 = vld [vmem:[#allocation5 + $0x30] sm:$0xf]
    %v284 = vld [vmem:[#allocation5 + $0x34] sm:$0xf]
    %v285 = vld [vmem:[#allocation5 + $0x38] sm:$0xf]
    %v286 = vld [vmem:[#allocation5 + $0x3c] sm:$0xf]
    %v287 = vld [vmem:[%s6] sm:$0x1]
    %v289 = vlaneseq
    %v290 = vshrl.u32 %v289, 7
    %v291 = vsub.s32 0, %v290
    %v292 = vrot.slane %v287, %v291
    %v310 = vunpack.c.l.b16 %v271
    %v311 = vunpack.c.l.b16 %v272
    %v312 = vunpack.c.l.b16 %v273
    %v313 = vunpack.c.l.b16 %v274
    %v314 = vunpack.c.l.b16 %v275
    %v315 = vunpack.c.l.b16 %v276
    %v316 = vunpack.c.l.b16 %v277
    %v317 = vunpack.c.l.b16 %v278
    %v318 = vunpack.c.l.b16 %v279
    %v319 = vunpack.c.l.b16 %v280
    %v320 = vunpack.c.l.b16 %v281
    %v321 = vunpack.c.l.b16 %v282
    %v322 = vunpack.c.l.b16 %v283
    %v323 = vunpack.c.l.b16 %v284
    %v324 = vunpack.c.l.b16 %v285
    %v325 = vunpack.c.l.b16 %v286
    %v326 = vpack.c.b16 %v311, %v310
    %v327 = vpack.c.b16 %v313, %v312
    %v328 = vpack.c.b16 %v315, %v314
    %v329 = vpack.c.b16 %v317, %v316
    %v330 = vpack.c.b16 %v319, %v318
    %v331 = vpack.c.b16 %v321, %v320
    %v332 = vpack.c.b16 %v323, %v322
    %v333 = vpack.c.b16 %v325, %v324
    %342 = vmatprep.subr.bf16.mxu0 0
    %343 = vmatpush1.bf16.msra.mxu0 %v333
    %344 = vmatprep.subr.bf16.mxu0 0
    %345 = vmatpush1.bf16.msra.mxu0 %v332
    %346 = vmatprep.subr.bf16.mxu0 0
    %347 = vmatpush1.bf16.msra.mxu0 %v331
    %348 = vmatprep.subr.bf16.mxu0 0
    %349 = vmatpush1.bf16.msra.mxu0 %v330
    %350 = vmatprep.subr.bf16.mxu0 0
    %351 = vmatpush1.bf16.msra.mxu0 %v329
    %352 = vmatprep.subr.bf16.mxu0 0
    %353 = vmatpush1.bf16.msra.mxu0 %v328
    %354 = vmatprep.subr.bf16.mxu0 0
    %355 = vmatpush1.bf16.msra.mxu0 %v327
    %356 = vmatprep.subr.bf16.mxu0 0
    %357 = vmatpush1.bf16.msra.mxu0 %v326
    %358 = vmatprep.subr.bf16.mxu0 0
    %359 = vmatpush2.bf16.msra.mxu0 0
    %360 = vmatprep.subr.bf16.mxu0 0
    %361 = vmatpush2.bf16.msra.mxu0 0
    %362 = vmatprep.subr.bf16.mxu0 0
    %363 = vmatpush2.bf16.msra.mxu0 0
    %364 = vmatprep.subr.bf16.mxu0 0
    %365 = vmatpush2.bf16.msra.mxu0 0
    %366 = vmatprep.subr.bf16.mxu0 0
    %367 = vmatpush2.bf16.msra.mxu0 0
    %368 = vmatprep.subr.bf16.mxu0 0
    %369 = vmatpush2.bf16.msra.mxu0 0
    %370 = vmatprep.subr.bf16.mxu0 0
    %371 = vmatpush2.bf16.msra.mxu0 0
    %372 = vmatprep.subr.bf16.mxu0 0
    %373 = vmatpush2.bf16.msra.mxu0 0
    %374 = vmatprep.mubr.bf16.mxu0 0
    %375 = vmatmul.mubr.bf16.gmra.mxu0 %v270
    %v376 = vpop.f32.mrf.mxu0
    %v377 = vadd.f32 %v292, %v376
    %v378 = vpop.f32.mrf.mxu0
    %v379 = vpop.f32.mrf.mxu0
    %v380 = vpop.f32.mrf.mxu0
    %381 = vdwg.mxu0
    %382 = vst [vmem:[#allocation7] sm:$0xff] %v377
    // Predicated region
    $region38: #{tpu_custom_call.1} parent=1 // pred_check
      _
    $region39: #{tpu_custom_call.1} parent=1 // pred_check_branch
      %384 = sbr.rel (0) target = $region41
    $region40: #{tpu_custom_call.1} parent=1 // pred_region
      %s386 = ssub.s32 128, 128
      %387 = vsyncadd [#allocation4], %s386
      %s389 = sshll.u32 [#allocation7], 4
      %s390 = int_to_ptr.vmem [resolvable:$true] %s389
      %392 = dma.vmem_to_hbm [thread:$0]  %s390, 128, %s7, [#allocation4]
    $region41: #{tpu_custom_call.1} parent=1 // pred_fallthru
      _
    // Predicated region
    $region42: #{tpu_custom_call.1} parent=1 // pred_check
      _
    $region43: #{tpu_custom_call.1} parent=1 // pred_check_branch
      %394 = sbr.rel (0) target = $region45
    $region44: #{tpu_custom_call.1} parent=1 // pred_region
      %395 = dma.done [#allocation4], 128
    $region45: #{tpu_custom_call.1} parent=1 // pred_fallthru
      _
    %396 = vsyncpa [#allocation3], 1
    %397 = vsyncpa [#allocation6], 1
    %398 = vsyncpa [#allocation4], 1

</llo_original>
